<compile_context>
chip_gen: v5e
topology: v5e:2x2
jax: 0.10.0
libtpu: 0.0.40
codegen_flags: <defaults>
</compile_context>

<pallas_src>
import jax
import jax.numpy as jnp
import numpy as np
from jax.experimental import pallas as pl
from jax.experimental.pallas import tpu as pltpu


# ----------------------------------------------------------------------------
# Kernel: tiled A_hat @ Yf with f32 accumulation directly into the output tile
# ----------------------------------------------------------------------------
def _gcn_kernel(a_ref, y_ref, o_ref):
    """Grid = (row tiles i ["parallel"], lane tiles j ["parallel"],
               sensor-contraction tiles k ["arbitrary"]).

    a_ref : (TM, TK)  bf16  row/col tile of A_hat
    y_ref : (TK, TL)  bf16  tile of the batch-folded, W-transformed features
    o_ref : (TM, TL)  f32   output tile (block index constant over k -> resident,
                            used directly as the accumulator)
    """
    @pl.when(pl.program_id(2) == 0)
    def _init():
        o_ref[...] = jnp.zeros_like(o_ref)

    # Dominant FLOPs: bf16 x bf16 -> f32 accumulation on the MXU.
    o_ref[...] += jnp.dot(a_ref[...], y_ref[...],
                          preferred_element_type=jnp.float32)


# ----------------------------------------------------------------------------
# Tiling helpers (never fall back to tiny tiles; pad instead)
# ----------------------------------------------------------------------------
def _round_up(n: int, m: int) -> int:
    return ((n + m - 1) // m) * m


def _row_tiling(n: int):
    """Sensor-axis tiling: returns (n_pad, tm, tk).

    n < 256      -> full-extent single tile (always a legal block shape).
    n >= 256     -> zero-pad to a multiple of 128; TK = 256 when possible
                    (v6e/v7x MXU depth), else 128 (v5e-native).  TM = 128 until
                    N_pad >= 512 so the parallel row axis has >= 2 tiles for
                    v7x's two TensorCores.
    """
    if n < 256:
        return n, n, n
    n_pad = _round_up(n, 128)
    tk = 256 if n_pad % 256 == 0 else 128
    tm = 256 if (n_pad % 256 == 0 and n_pad >= 512) else 128
    return n_pad, tm, tk


def _lane_tiling(l: int):
    """Folded lane-dim (B*O) tiling: returns (l_pad, tl).

    Small/medium lane dims stay as one full-extent block; very wide folds get
    a 512-2048-lane grid axis so per-step VMEM stays bounded (independent of B)
    on v5e's 16 MiB scoped default and v7x's 64 MiB physical VMEM.
    """
    if l <= 2048:
        return l, l
    l_pad = _round_up(l, 512)
    for t in (2048, 1024, 512):
        if l_pad % t == 0:
            return l_pad, t
    return l_pad, 512  # unreachable (l_pad is a multiple of 512)


# ----------------------------------------------------------------------------
# Wrapper
# ----------------------------------------------------------------------------
@jax.jit
def gcn_layer(a_hat, x, w):
    """Pallas implementation of GCNLayer.forward(A_hat, X).

    a_hat : [N, N]  — pass it pre-cast to bf16 (cast once per graph, outside
                      the per-step jit); an f32 A_hat is accepted but costs an
                      extra HBM cast pass per call.
    x     : [N, F] or [N, B, F]
    w     : [F, O]
    """
    squeeze = x.ndim == 2
    if squeeze:
        x = x[:, None, :]                                  # [N, 1, F]
    n, b, f = x.shape
    f_in, o = w.shape
    assert f == f_in, "feature dim of X must match W's in_size"

    # Apply W first (matmul associativity): (A_hat @ X) @ W == A_hat @ (X @ W).
    # This is the tiny N*B*F*O term (K = F = 8); the Pallas kernel then does
    # the dominant N^2 * (B*O) graph-diffusion matmul.
    y = jnp.einsum('nbf,fo->nbo',
                   x.astype(jnp.float32), w.astype(jnp.float32))
    yf = y.reshape(n, b * o).astype(jnp.bfloat16)          # [N, B*O], lane-folded
    a_bf = a_hat if a_hat.dtype == jnp.bfloat16 else a_hat.astype(jnp.bfloat16)

    l = b * o
    n_pad, tm, tk = _row_tiling(n)
    l_pad, tl = _lane_tiling(l)

    # Zero-padding keeps MXU-shaped tiles without dropping or corrupting rows:
    # padded A_hat rows/cols are zero and padded output rows/cols are sliced off.
    if n_pad != n:
        a_bf = jnp.pad(a_bf, ((0, n_pad - n), (0, n_pad - n)))
    if n_pad != n or l_pad != l:
        yf = jnp.pad(yf, ((0, n_pad - n), (0, l_pad - l)))

    grid = (n_pad // tm, l_pad // tl, n_pad // tk)

    out2d = pl.pallas_call(
        _gcn_kernel,
        out_shape=jax.ShapeDtypeStruct((n_pad, l_pad), jnp.float32),
        grid_spec=pltpu.PrefetchScalarGridSpec(
            num_scalar_prefetch=0,
            grid=grid,
            in_specs=[
                pl.BlockSpec((tm, tk), lambda i, j, k: (i, k)),  # A_hat tile
                pl.BlockSpec((tk, tl), lambda i, j, k: (k, j)),  # folded X@W tile
            ],
            out_specs=pl.BlockSpec((tm, tl), lambda i, j, k: (i, j)),
        ),
        # Row and lane axes are independent ("parallel", shard across v7x's two
        # TensorCores); the sensor-contraction axis carries the resident output
        # accumulator ("arbitrary", last).
        compiler_params=pltpu.CompilerParams(
            dimension_semantics=("parallel", "parallel", "arbitrary")),
    )(a_bf, yf)

    out = out2d[:n, :l].astype(x.dtype).reshape(n, b, o)   # slice pad, free reshape
    return out[:, 0, :] if squeeze else out


# ----------------------------------------------------------------------------
# Deterministic dense analogue of create_A_hat (the original reads a CSV and
# builds a scipy sparse matrix; here we synthesize an equivalent dense A_hat).
# ----------------------------------------------------------------------------
def make_a_hat(n, key):
    """Gaussian-kernel weighted adjacency + identity, symmetrically
    normalized D^-1/2 A D^-1/2 (dense analogue of create_A_hat)."""
    dist = jax.random.uniform(key, (n, n), dtype=jnp.float32,
                              minval=0.0, maxval=100.0)
    dist = (dist + dist.T) * 0.5
    dist = dist * (1.0 - jnp.eye(n, dtype=jnp.float32))
    sigma_sq = jnp.std(dist) ** 2
    a = jnp.exp(-(dist ** 2) / sigma_sq) + jnp.eye(n, dtype=jnp.float32)
    d = jnp.sum(a, axis=1)
    d_inv_sqrt = 1.0 / jnp.sqrt(d)
    return (a * d_inv_sqrt[:, None]) * d_inv_sqrt[None, :]


if __name__ == "__main__":
    key = jax.random.PRNGKey(0)
    k_a, k_x, k_w = jax.random.split(key, 3)

    N = 20          # graph nodes (the port graph in the script has 20 nodes)
    B = 16          # 16 folded time steps -> lane dim B*O = 128 (lane-dense)
    F_IN = 8        # in_size  (== num_features in the original script)
    F_OUT = 8       # out_size

    a_hat = make_a_hat(N, k_a)                                    # [N, N] f32
    # Cast A_hat to bf16 ONCE per graph, outside the per-step jitted call.
    a_hat_bf16 = a_hat.astype(jnp.bfloat16)

    x = jax.random.normal(k_x, (N, B, F_IN), dtype=jnp.float32)   # [N, B, F]

    # kaiming_uniform_ on W of shape (in_size, out_size): torch fan_in = W.size(1)
    bound = float(np.sqrt(6.0 / F_OUT))
    w = jax.random.uniform(k_w, (F_IN, F_OUT), dtype=jnp.float32,
                           minval=-bound, maxval=bound)

    # 3D (batched) path
    out3 = jax.block_until_ready(gcn_layer(a_hat_bf16, x, w))
    ref3 = np.einsum('nm,mbf,fo->nbo',
                     np.asarray(a_hat, np.float64),
                     np.asarray(x, np.float64),
                     np.asarray(w, np.float64))
    # A_hat / (X@W) reach the MXU in bf16 (f32 accumulation): per-element input
    # rounding <= 2^-8, so O(1) outputs match the f64 reference to ~1e-2.
    np.testing.assert_allclose(np.asarray(out3, np.float64), ref3,
                               rtol=5e-2, atol=5e-2)

    # 2D path
    x2d = x[:, 0, :]
    out2 = jax.block_until_ready(gcn_layer(a_hat_bf16, x2d, w))
    ref2 = (np.asarray(a_hat, np.float64) @ np.asarray(x2d, np.float64)
            @ np.asarray(w, np.float64))
    np.testing.assert_allclose(np.asarray(out2, np.float64), ref2,
                               rtol=5e-2, atol=5e-2)

    print("KERNEL_OK")
</pallas_src>

<mosaic_0001>
module attributes {stable_mosaic.version = 11 : i64} {
  func.func @_gcn_kernel(%arg0: i32, %arg1: i32, %arg2: i32, %arg3: memref<20x20xbf16, #tpu.memory_space<vmem>>, %arg4: memref<20x128xbf16, #tpu.memory_space<vmem>>, %arg5: memref<20x128xf32, #tpu.memory_space<vmem>>) attributes {dimension_semantics = [#tpu.dimension_semantics<parallel>, #tpu.dimension_semantics<parallel>, #tpu.dimension_semantics<arbitrary>], iteration_bounds = array<i64: 1, 1, 1>, scalar_prefetch = 0 : i64, scratch_operands = 0 : i64, tpu.core_type = #tpu.core_type<tc>, window_params = [{transform_indices = @transform_0, window_bounds = array<i64: 20, 20>}, {transform_indices = @transform_1, window_bounds = array<i64: 20, 128>}, {transform_indices = @transform_2, window_bounds = array<i64: 20, 128>}]} {
    %c0_i32 = arith.constant 0 : i32
    %0 = arith.cmpi eq, %arg2, %c0_i32 : i32
    %1 = arith.extui %0 : i1 to i32
    %c0_i32_0 = arith.constant 0 : i32
    %2 = arith.cmpi ne, %1, %c0_i32_0 : i32
    scf.if %2 {
      %cst_8 = arith.constant 0.000000e+00 : f32
      %9 = vector.broadcast %cst_8 : f32 to vector<20x128xf32>
      %c0_9 = arith.constant 0 : index
      %c0_10 = arith.constant 0 : index
      %10 = vector.load %arg5[%c0_9, %c0_10] : memref<20x128xf32, #tpu.memory_space<vmem>>, vector<20x128xf32>
      tpu.vector_store %arg5[%c0_9, %c0_10], %9 {strides = array<i32>} : memref<20x128xf32, #tpu.memory_space<vmem>>, vector<20x128xf32>,
    } else {
    }
    %c0 = arith.constant 0 : index
    %c0_1 = arith.constant 0 : index
    %3 = vector.load %arg5[%c0, %c0_1] : memref<20x128xf32, #tpu.memory_space<vmem>>, vector<20x128xf32>
    %c0_2 = arith.constant 0 : index
    %c0_3 = arith.constant 0 : index
    %4 = vector.load %arg3[%c0_2, %c0_3] : memref<20x20xbf16, #tpu.memory_space<vmem>>, vector<20x20xbf16>
    %c0_4 = arith.constant 0 : index
    %c0_5 = arith.constant 0 : index
    %5 = vector.load %arg4[%c0_4, %c0_5] : memref<20x128xbf16, #tpu.memory_space<vmem>>, vector<20x128xbf16>
    %cst = arith.constant dense<0.000000e+00> : vector<20x128xf32>
    %6 = tpu.matmul %4, %5, %cst {dimension_numbers = #tpu.dot_dimension_numbers<[1], [0], [0], [1], [0, 0, 1, 1], [], []>} : vector<20x20xbf16>, vector<20x128xbf16>, vector<20x128xf32> -> vector<20x128xf32>
    %7 = arith.addf %3, %6 : vector<20x128xf32>
    %c0_6 = arith.constant 0 : index
    %c0_7 = arith.constant 0 : index
    %8 = vector.load %arg5[%c0_6, %c0_7] : memref<20x128xf32, #tpu.memory_space<vmem>>, vector<20x128xf32>
    tpu.vector_store %arg5[%c0_6, %c0_7], %7 {strides = array<i32>} : memref<20x128xf32, #tpu.memory_space<vmem>>, vector<20x128xf32>,
    return
  }
  func.func @transform_0(%arg0: i32, %arg1: i32, %arg2: i32) -> (i32, i32) {
    %c0_i32 = arith.constant 0 : i32
    return %arg0, %arg2 : i32, i32
  }
  func.func @transform_1(%arg0: i32, %arg1: i32, %arg2: i32) -> (i32, i32) {
    %c0_i32 = arith.constant 0 : i32
    return %arg2, %arg1 : i32, i32
  }
  func.func @transform_2(%arg0: i32, %arg1: i32, %arg2: i32) -> (i32, i32) {
    %c0_i32 = arith.constant 0 : i32
    return %arg0, %arg1 : i32, i32
  }
}

</mosaic_0001>

<llo_original>
// kernel: gcn_layer.1
$region0: #{gcn_layer.1}
  #allocation0 [shape = 'u32[]', space=smem, size = 0x4, offset = 0x4, fixed_abs, tag = 'smem constant byte address 0x4 - core index']
  #allocation1 [shape = 'u32[72,128]{1,0:T(1,128)}', space=vmem, size = 0x9000, scoped, tag = 'internal scratch']
  %s0 = inlined_call_operand.vmem [shape: bf16[20,20], index: 0, kind: input, shape index: {}]
  %s1 = inlined_call_operand.vmem [shape: bf16[20,128], index: 1, kind: input, shape index: {}]
  %s2 = inlined_call_operand.vmem [shape: f32[20,128], index: 2, kind: output, shape index: {}]
  %s3 = sld [smem:[#allocation0]]
  $region22: #{gcn_layer.1} parent=0
    _
  %s5 = ssub.s32 1, %s3
  %s6 = scalar_select 0, %s5, %s3
  // Predicated region
  $region2: #{gcn_layer.1} parent=0 // pred_check
    _
  $region3: #{gcn_layer.1} parent=0 // pred_check_branch
    %8 = sbr.rel (0) target = $region5
  $region4: #{gcn_layer.1} parent=0 // pred_region
    _
  $region5: #{gcn_layer.1} parent=0 // pred_fallthru
    _
  // Predicated region
  $region6: #{gcn_layer.1} parent=0 // pred_check
    _
  $region7: #{gcn_layer.1} parent=0 // pred_check_branch
    %10 = sbr.rel (0) target = $region9
  $region8: #{gcn_layer.1} parent=0 // pred_region
    _
  $region9: #{gcn_layer.1} parent=0 // pred_fallthru
    _
  %p12 = scmp.eq.s32.totalorder 0, 0
  // Predicated region
  $region10: #{gcn_layer.1} parent=0 // pred_check
    %p13 = pneg %p12
  $region11: #{gcn_layer.1} parent=0 // pred_check_branch
    %15 = sbr.rel (%p13) target = $region13
  $region12: #{gcn_layer.1} parent=0 // pred_region
    %16 = vst [vmem:[%s2] sm:$0xff] 0.0
    %17 = vst [vmem:[%s2 + $0x8] sm:$0xff] 0.0
    %18 = vst [vmem:[%s2 + $0x10] sm:$0xf] 0.0
  $region13: #{gcn_layer.1} parent=0 // pred_fallthru
    _
  %v19 = vld [vmem:[%s2] sm:$0xff]
  %v20 = vld [vmem:[%s2 + $0x8] sm:$0xff]
  %v21 = vld [vmem:[%s2 + $0x10] sm:$0xf]
  %v22 = vld [vmem:[%s0] sm:$0xf]
  %v23 = vld [vmem:[%s0 + $0x4] sm:$0xf]
  %v24 = vld [vmem:[%s0 + $0x8] sm:$0x3]
  %v25 = vld [vmem:[%s1] sm:$0xf]
  %v26 = vld [vmem:[%s1 + $0x4] sm:$0xf]
  %v27 = vld [vmem:[%s1 + $0x8] sm:$0x3]
  %v31 = vunpack.c.l.b16 %v22
  %v32 = vunpack.c.l.b16 %v23
  %v33 = vunpack.c.l.b16 %v24
  %v34 = vpack.c.b16 %v32, %v31
  %v35 = vpack.c.b16 %v33, %v33
  %v39 = vunpack.c.l.b16 %v25
  %v40 = vunpack.c.l.b16 %v26
  %v41 = vunpack.c.l.b16 %v27
  %v42 = vpack.c.b16 %v40, %v39
  %v43 = vpack.c.b16 %v41, %v41
  %vm45 = vcmask 162816
  %v47 = vsel %vm45, %v34, 0
  %v50 = vsel %vm45, %v35, 0
  %vm52 = vcmask 1041408
  %v54 = vsel %vm52, %v43, 0
  %56 = vmatpush.bf16.msra.mxu0 0
  %57 = vmatpush.bf16.msra.mxu0 0
  %58 = vmatpush.bf16.msra.mxu0 0
  %59 = vmatpush.bf16.msra.mxu0 0
  %60 = vmatpush.bf16.msra.mxu0 0
  %61 = vmatpush.bf16.msra.mxu0 0
  %62 = vmatpush.bf16.msra.mxu0 %v54
  %63 = vmatpush.bf16.msra.mxu0 %v42
  %64 = vmatmul.bf16.gmra.mxu0 %v47
  %v65 = vpop.f32.mrf.mxu0
  %v66 = vadd.f32 0.0, %v65
  %v67 = vpop.f32.mrf.mxu0
  %v68 = vadd.f32 0.0, %v67
  %69 = vmatmul.bf16.gmra.mxu0 %v50
  %v70 = vpop.f32.mrf.mxu0
  %v71 = vadd.f32 0.0, %v70
  %v72 = vpop.f32.mrf.mxu0
  %73 = vdwg.mxu0
  %v74 = vadd.f32 %v19, %v66
  %v75 = vadd.f32 %v20, %v68
  %v76 = vadd.f32 %v21, %v71
  %77 = vst [vmem:[%s2] sm:$0xff] %v74
  %78 = vst [vmem:[%s2 + $0x8] sm:$0xff] %v75
  %79 = vst [vmem:[%s2 + $0x10] sm:$0xf] %v76
  // Predicated region
  $region14: #{gcn_layer.1} parent=0 // pred_check
    _
  $region15: #{gcn_layer.1} parent=0 // pred_check_branch
    %81 = sbr.rel (0) target = $region17
  $region16: #{gcn_layer.1} parent=0 // pred_region
    _
  $region17: #{gcn_layer.1} parent=0 // pred_fallthru
    _
  // Predicated region
  $region18: #{gcn_layer.1} parent=0 // pred_check
    _
  $region19: #{gcn_layer.1} parent=0 // pred_check_branch
    %83 = sbr.rel (0) target = $region21
  $region20: #{gcn_layer.1} parent=0 // pred_region
    _
  $region21: #{gcn_layer.1} parent=0 // pred_fallthru
    _

</llo_original>
